<compile_context>
chip_gen: v7x
topology: tpu7x:2x2x1
jax: 0.10.0
libtpu: 0.0.40
codegen_flags: <defaults>
</compile_context>

<pallas_src>
import functools

import numpy as np
import jax
import jax.numpy as jnp
from jax.experimental import pallas as pl
from jax.experimental.pallas import tpu as pltpu


def _round_up(x, m):
    return ((x + m - 1) // m) * m


# ---------------------------------------------------------------------------
# Kernel 1: ClassificationHead  (dropout p=0 -> identity)
#   h = tanh(x @ W1 + b1) ;  s = <h, w2> + b2   (lane-dense (1, TM) per tile)
# ---------------------------------------------------------------------------
def head_kernel(x_ref, w1_ref, b1_ref, w2_ref, b2_ref, out_ref, *, mx_dtype):
    # In-kernel cast: the f32 (TM, H) tile read pipelines under the matmul,
    # no separate HBM cast/pad pass over the activations in the wrapper.
    x = x_ref[...].astype(mx_dtype)                                # (TM, H)
    # dense: (TM, H) @ (H, H) on the MXU, f32 accumulation
    h = jnp.dot(x, w1_ref[...], preferred_element_type=jnp.float32)
    # bias + tanh stay f32 on the vector path (v5e VPU/EUP have no bf16)
    h = jnp.tanh(h + b1_ref[...])                                  # (TM, H) f32
    # out_proj (H -> 1) in bf16 on the MXU: contract H of the (1, H) weight
    # row against H of h, producing a lane-dense (1, TM) score row directly
    # (wide unmasked stores; bf16 keeps this small contraction hidden under
    # the main matmul even on the transposed-operand path).
    s = jax.lax.dot_general(
        w2_ref[...], h.astype(mx_dtype),
        dimension_numbers=(((1,), (1,)), ((), ())),
        preferred_element_type=jnp.float32)                        # (1, TM)
    out_ref[0] = s + b2_ref[0]                                     # b2: SMEM scalar


def classification_head(x, w1, b1, w2_row, b2, *, tm=512, use_bf16=True):
    """scores = tanh(x @ W1 + b1) @ w2^T + b2, tiled over tokens.

    x: (T, H) in its native dtype (cast to bf16 inside the kernel).
    Returns (g, 1, tm_eff) lane-dense score rows covering g*tm_eff >= T tokens.
    """
    assert tm % 128 == 0
    t, h_dim = x.shape
    mx_dtype = jnp.bfloat16 if use_bf16 else jnp.float32

    if t <= tm:
        # Small inputs: one exact tile; pad at most 7 rows (negligible).
        tm_eff = max(8, _round_up(t, 8))
        if tm_eff != t:
            x = jnp.pad(x, ((0, tm_eff - t), (0, 0)))
        g = 1
    else:
        # Large inputs: full tiles + one partial final tile.  The overhang
        # rows of the final tile are unspecified and are masked downstream.
        tm_eff = tm
        g = pl.cdiv(t, tm_eff)
    # NOTE (v7x): keep g >= 2 / even when possible so ("parallel",) shards the
    # token tiles evenly across both TensorCores.
    # TODO(synk): for H >= 2048 add a K (hidden-dim) grid axis with an f32
    # accumulator scratch instead of keeping W1 fully resident (v7x VMEM).

    kernel = functools.partial(head_kernel, mx_dtype=mx_dtype)
    return pl.pallas_call(
        kernel,
        out_shape=jax.ShapeDtypeStruct((g, 1, tm_eff), jnp.float32),
        grid=(g,),
        in_specs=[
            pl.BlockSpec((tm_eff, h_dim), lambda i: (i, 0)),          # x tile (streams)
            pl.BlockSpec((h_dim, h_dim), lambda i: (0, 0),
                         pipeline_mode=pl.Buffered(1)),               # W1 resident
            pl.BlockSpec((1, h_dim), lambda i: (0, 0),
                         pipeline_mode=pl.Buffered(1)),               # b1 resident
            pl.BlockSpec((1, h_dim), lambda i: (0, 0),
                         pipeline_mode=pl.Buffered(1)),               # w2 row resident
            pl.BlockSpec(memory_space=pltpu.MemorySpace.SMEM),        # b2 scalar
        ],
        out_specs=pl.BlockSpec((1, 1, tm_eff), lambda i: (i, 0, 0)),
        compiler_params=pltpu.CompilerParams(
            dimension_semantics=("parallel",),
            vmem_limit_bytes=48 * 1024 * 1024),       # v5e scoped default is 16 MiB
    )(x, w1.astype(mx_dtype), b1.astype(jnp.float32),
      w2_row.astype(mx_dtype), b2.reshape(1).astype(jnp.float32))


# ---------------------------------------------------------------------------
# Kernel 2: masked softmax over CTS positions + log_softmax of the resulting
#           probabilities (matches reference: gather -> softmax -> log_softmax)
#           on a lane+sublane-filled (R, 128) layout, mask computed in-kernel
#           from input_ids and an SMEM cts_token_id scalar.
# ---------------------------------------------------------------------------
def masked_double_softmax_kernel(s_ref, ids_ref, tid_ref, p_ref, lp_ref):
    s = s_ref[...]                                              # (R, C) f32
    m = ids_ref[...] == tid_ref[0]                              # (R, C) bool
    neg = jnp.float32(-1e30)

    # softmax restricted to masked (CTS) entries, over ALL elements
    s_m = jnp.where(m, s, neg)
    mx = jnp.max(jnp.max(s_m, axis=-1, keepdims=True), axis=0, keepdims=True)
    e = jnp.where(m, jnp.exp(s_m - mx), 0.0)
    z = jnp.sum(jnp.sum(e, axis=-1, keepdims=True), axis=0, keepdims=True)
    z = jnp.maximum(z, jnp.float32(1e-30))          # guard: empty mask
    p = e / z
    p_ref[...] = p

    # log_softmax of the probabilities (the reference really does a double
    # softmax: log_softmax applied to the softmaxed cts_scores).
    # NOTE: lp is 0 at non-CTS positions; only valid under the KL mask.
    p_m = jnp.where(m, p, neg)
    mx2 = jnp.max(jnp.max(p_m, axis=-1, keepdims=True), axis=0, keepdims=True)
    e2 = jnp.where(m, jnp.exp(p_m - mx2), 0.0)
    z2 = jnp.sum(jnp.sum(e2, axis=-1, keepdims=True), axis=0, keepdims=True)
    z2 = jnp.maximum(z2, jnp.float32(1e-30))
    lp_ref[...] = jnp.where(m, (p - mx2) - jnp.log(z2), 0.0)


def masked_double_softmax(scores_2d, ids_2d, cts_token_id):
    r, c = scores_2d.shape
    return pl.pallas_call(
        masked_double_softmax_kernel,
        out_shape=(jax.ShapeDtypeStruct((r, c), jnp.float32),
                   jax.ShapeDtypeStruct((r, c), jnp.float32)),
        grid=(1,),
        in_specs=[pl.BlockSpec((r, c), lambda i: (0, 0)),
                  pl.BlockSpec((r, c), lambda i: (0, 0)),
                  pl.BlockSpec(memory_space=pltpu.MemorySpace.SMEM)],
        out_specs=(pl.BlockSpec((r, c), lambda i: (0, 0)),
                   pl.BlockSpec((r, c), lambda i: (0, 0))),
    )(scores_2d.astype(jnp.float32), ids_2d.astype(jnp.int32),
      jnp.asarray([cts_token_id], dtype=jnp.int32))


# ---------------------------------------------------------------------------
# Loss glue (tiny, shape-static) — plain JAX, fully jittable, no host sync
# ---------------------------------------------------------------------------
def kl_div_batchmean_masked(log_pred, target, mask):
    # nn.KLDivLoss(reduction='batchmean') with an unsqueezed batch of size 1:
    # sum_i target_i * (log(target_i) - log_pred_i); target==0 contributes 0.
    safe_t = jnp.where(target > 0, target, 1.0)
    pointwise = jnp.where(mask & (target > 0),
                          target * (jnp.log(safe_t) - log_pred), 0.0)
    return jnp.sum(pointwise)


def margin_ranking_loss(pred, lab, valid):
    # nn.MarginRankingLoss(margin=0, reduction='mean') over all pairs i < j,
    # restricted to valid (non-padded) CTS entries.  Ties give y = -1, exactly
    # as in the reference's (labels[i] > labels[j]) * 2 - 1 construction.
    k = pred.shape[0]
    ii = jnp.arange(k)[:, None]
    jj = jnp.arange(k)[None, :]
    pair = (ii < jj) & valid[:, None] & valid[None, :]
    y = jnp.where(lab[:, None] > lab[None, :], 1.0, -1.0)
    per = jnp.maximum(0.0, -y * (pred[:, None] - pred[None, :]))
    n = jnp.maximum(jnp.sum(pair.astype(jnp.float32)), 1.0)
    return jnp.sum(jnp.where(pair, per, 0.0)) / n


# ---------------------------------------------------------------------------
# Forward pass (post-encoder part of CitedTextSpanSelector)
# ---------------------------------------------------------------------------
def cited_text_span_selector_forward(bert_out, input_ids, params,
                                     cts_token_id, labels=None,
                                     max_cts=None, tm=512, use_bf16=True):
    # TODO(synk): the pretrained seq2seq encoder (self.bert /
    # AutoModelForSeq2SeqLM) is not reproducible in-script; its output
    # `bert_out` is taken as an input to this forward pass.
    b, s_len, h_dim = bert_out.shape
    w1, b1, w2_row, b2 = params
    t = b * s_len

    x = bert_out.reshape(t, h_dim)                  # TimeDistributed flatten
    scores3 = classification_head(x, w1, b1, w2_row, b2,
                                  tm=tm, use_bf16=use_bf16)     # (g, 1, TM)
    scores_flat = scores3.reshape(-1)               # len >= t, token order
    t_head = scores_flat.shape[0]

    # Softmax layout: fill lanes (128) AND sublanes (8) -> rows multiple of 8.
    # Only tiny 1-D vectors are padded here (no pass over (T, H) data).
    t_soft = _round_up(max(t, t_head), 8 * 128)
    scores_soft = jnp.pad(scores_flat, (0, t_soft - t_head))
    ids_flat = input_ids.reshape(-1).astype(jnp.int32)
    # pad with -1 (assumed != cts_token_id) so padded slots are never CTS
    ids_soft = jnp.pad(ids_flat, (0, t_soft - t), constant_values=-1)

    r = t_soft // 128
    p2, lp2 = masked_double_softmax(scores_soft.reshape(r, 128),
                                    ids_soft.reshape(r, 128), cts_token_id)
    probs = p2.reshape(-1)[:t]
    logprobs = lp2.reshape(-1)[:t]

    mask_flat = ids_flat == cts_token_id            # (t,) bool

    # device-side fixed-size gather of the CTS positions (no host-side
    # np.nonzero -> no device->host sync; max_cts must be static)
    k = t if max_cts is None else max_cts
    (idx,) = jnp.nonzero(mask_flat, size=k, fill_value=0)
    n_cts = jnp.sum(mask_flat)
    valid = jnp.arange(k) < n_cts
    cts_scores = jnp.where(valid, probs[idx], 0.0)

    loss = None
    if labels is not None:
        labels_flat = labels.reshape(-1)
        target = jnp.where(mask_flat, labels_flat, 0.0)
        kld_loss = kl_div_batchmean_masked(logprobs, target, mask_flat)
        cts_labels = jnp.where(valid, labels_flat[idx], 0.0)
        ranking_loss = margin_ranking_loss(cts_scores, cts_labels, valid)
        loss = ranking_loss + kld_loss
    return cts_scores, loss


# ---------------------------------------------------------------------------
# Demo
# ---------------------------------------------------------------------------
if __name__ == "__main__":
    B, S, H = 2, 16, 32
    CTS_TOKEN_ID = 5
    VOCAB = 50

    key = jax.random.PRNGKey(0)
    k_x, k_ids, k_w1, k_b1, k_w2, k_b2, k_lab = jax.random.split(key, 7)

    # synthetic encoder output (stands in for self.bert(**encoded_dict)[0])
    bert_out = jax.random.normal(k_x, (B, S, H), dtype=jnp.float32)

    # input ids with a deterministic set of CTS tokens
    input_ids = jax.random.randint(k_ids, (B, S), 6, VOCAB, dtype=jnp.int32)
    input_ids = input_ids.at[0, 2].set(CTS_TOKEN_ID)
    input_ids = input_ids.at[0, 9].set(CTS_TOKEN_ID)
    input_ids = input_ids.at[1, 4].set(CTS_TOKEN_ID)
    input_ids = input_ids.at[1, 12].set(CTS_TOKEN_ID)

    # ClassificationHead parameters (deterministic init, ~PyTorch Linear scale)
    bound1 = 1.0 / np.sqrt(H)
    w1 = jax.random.uniform(k_w1, (H, H), jnp.float32, -bound1, bound1)
    b1 = jax.random.uniform(k_b1, (1, H), jnp.float32, -bound1, bound1)
    w2 = jax.random.uniform(k_w2, (1, H), jnp.float32, -bound1, bound1)  # row
    b2 = jax.random.uniform(k_b2, (1,), jnp.float32, -bound1, bound1)
    params = (w1, b1, w2, b2)

    # labels: a probability distribution over the CTS positions
    raw = jax.random.uniform(k_lab, (B, S), jnp.float32, 0.1, 1.0)
    mask_f = (input_ids == CTS_TOKEN_ID).astype(jnp.float32)
    labels = raw * mask_f
    labels = labels / jnp.sum(labels)

    fwd = jax.jit(functools.partial(cited_text_span_selector_forward,
                                    cts_token_id=CTS_TOKEN_ID, max_cts=4))
    cts_scores, loss = fwd(bert_out, input_ids, params, labels=labels)
    jax.block_until_ready(cts_scores)
    jax.block_until_ready(loss)

    assert cts_scores.shape == (4,)
    assert np.isfinite(np.asarray(loss))
    assert abs(float(jnp.sum(cts_scores)) - 1.0) < 1e-4
    print("KERNEL_OK")
</pallas_src>

<mosaic_0001>
module attributes {stable_mosaic.version = 11 : i64} {
  func.func private @main(%arg0: i32) attributes {dimension_semantics = [#tpu.dimension_semantics<core_parallel>], iteration_bounds = array<i64: 2>, tpu.core_type = #tpu.core_type<sc_scalar_subcore>, window_params = []} {
    return
  }
}

module attributes {stable_mosaic.version = 11 : i64} {
  func.func private @main(%arg0: i32) attributes {dimension_semantics = [#tpu.dimension_semantics<core_parallel>], iteration_bounds = array<i64: 2>, tpu.core_type = #tpu.core_type<sc_scalar_subcore>, window_params = []} {
    return
  }
}

module attributes {stable_mosaic.version = 11 : i64} {
  func.func @head_kernel(%arg0: i32, %arg1: memref<32x32xf32, #tpu.memory_space<vmem>>, %arg2: memref<32x32xbf16, #tpu.memory_space<vmem>>, %arg3: memref<1x32xf32, #tpu.memory_space<vmem>>, %arg4: memref<1x32xbf16, #tpu.memory_space<vmem>>, %arg5: memref<1xf32, #tpu.memory_space<smem>>, %arg6: memref<1x1x32xf32, #tpu.memory_space<vmem>>) attributes {dimension_semantics = [#tpu.dimension_semantics<parallel>], iteration_bounds = array<i64: 1>, scalar_prefetch = 0 : i64, scratch_operands = 0 : i64, tpu.core_type = #tpu.core_type<tc>, window_params = [{transform_indices = @transform_0, window_bounds = array<i64: 32, 32>}, {pipeline_mode = #tpu.pipeline_mode<synchronous>, transform_indices = @transform_1, window_bounds = array<i64: 32, 32>}, {pipeline_mode = #tpu.pipeline_mode<synchronous>, transform_indices = @transform_2, window_bounds = array<i64: 1, 32>}, {pipeline_mode = #tpu.pipeline_mode<synchronous>, transform_indices = @transform_3, window_bounds = array<i64: 1, 32>}, {transform_indices = @transform_4, window_bounds = array<i64: 1>}, {transform_indices = @transform_5, window_bounds = array<i64: 1, 1, 32>}]} {
    %c0 = arith.constant 0 : index
    %c0_0 = arith.constant 0 : index
    %0 = vector.load %arg1[%c0, %c0_0] : memref<32x32xf32, #tpu.memory_space<vmem>>, vector<32x32xf32>
    %1 = arith.truncf %0 : vector<32x32xf32> to vector<32x32xbf16>
    %c0_1 = arith.constant 0 : index
    %c0_2 = arith.constant 0 : index
    %2 = vector.load %arg2[%c0_1, %c0_2] : memref<32x32xbf16, #tpu.memory_space<vmem>>, vector<32x32xbf16>
    %cst = arith.constant dense<0.000000e+00> : vector<32x32xf32>
    %3 = tpu.matmul %1, %2, %cst {dimension_numbers = #tpu.dot_dimension_numbers<[1], [0], [0], [1], [0, 0, 1, 1], [], []>} : vector<32x32xbf16>, vector<32x32xbf16>, vector<32x32xf32> -> vector<32x32xf32>
    %c0_3 = arith.constant 0 : index
    %c0_4 = arith.constant 0 : index
    %4 = vector.load %arg3[%c0_3, %c0_4] : memref<1x32xf32, #tpu.memory_space<vmem>>, vector<1x32xf32>
    %5 = vector.broadcast %4 : vector<1x32xf32> to vector<32x32xf32>
    %6 = arith.addf %3, %5 : vector<32x32xf32>
    %7 = math.tanh %6 : vector<32x32xf32>
    %c0_5 = arith.constant 0 : index
    %c0_6 = arith.constant 0 : index
    %8 = vector.load %arg4[%c0_5, %c0_6] : memref<1x32xbf16, #tpu.memory_space<vmem>>, vector<1x32xbf16>
    %9 = arith.truncf %7 : vector<32x32xf32> to vector<32x32xbf16>
    %cst_7 = arith.constant dense<0.000000e+00> : vector<1x32xf32>
    %10 = tpu.matmul %8, %9, %cst_7 {dimension_numbers = #tpu.dot_dimension_numbers<[1], [1], [0], [0], [0, 0, 1, 0], [], []>} : vector<1x32xbf16>, vector<32x32xbf16>, vector<1x32xf32> -> vector<1x32xf32>
    %c0_8 = arith.constant 0 : index
    %11 = memref.load %arg5[%c0_8] : memref<1xf32, #tpu.memory_space<smem>>
    %12 = vector.broadcast %11 : f32 to vector<1x32xf32>
    %13 = arith.addf %10, %12 : vector<1x32xf32>
    %c0_9 = arith.constant 0 : index
    %c0_10 = arith.constant 0 : index
    %c0_11 = arith.constant 0 : index
    %14 = vector.load %arg6[%c0_9, %c0_10, %c0_11] : memref<1x1x32xf32, #tpu.memory_space<vmem>>, vector<1x1x32xf32>
    %15 = vector.shape_cast %14 : vector<1x1x32xf32> to vector<1x32xf32>
    %16 = vector.shape_cast %13 : vector<1x32xf32> to vector<1x1x32xf32>
    tpu.vector_store %arg6[%c0_9, %c0_10, %c0_11], %16 {strides = array<i32>} : memref<1x1x32xf32, #tpu.memory_space<vmem>>, vector<1x1x32xf32>,
    return
  }
  func.func @transform_0(%arg0: i32) -> (i32, i32) {
    %c0_i32 = arith.constant 0 : i32
    %c0_i32_0 = arith.constant 0 : i32
    return %arg0, %c0_i32 : i32, i32
  }
  func.func @transform_1(%arg0: i32) -> (i32, i32) {
    %c0_i32 = arith.constant 0 : i32
    %c0_i32_0 = arith.constant 0 : i32
    %c0_i32_1 = arith.constant 0 : i32
    return %c0_i32, %c0_i32_0 : i32, i32
  }
  func.func @transform_2(%arg0: i32) -> (i32, i32) {
    %c0_i32 = arith.constant 0 : i32
    %c0_i32_0 = arith.constant 0 : i32
    %c0_i32_1 = arith.constant 0 : i32
    return %c0_i32, %c0_i32_0 : i32, i32
  }
  func.func @transform_3(%arg0: i32) -> (i32, i32) {
    %c0_i32 = arith.constant 0 : i32
    %c0_i32_0 = arith.constant 0 : i32
    %c0_i32_1 = arith.constant 0 : i32
    return %c0_i32, %c0_i32_0 : i32, i32
  }
  func.func @transform_4(%arg0: i32) -> i32 {
    %c0_i32 = arith.constant 0 : i32
    %c0_i32_0 = arith.constant 0 : i32
    return %c0_i32 : i32
  }
  func.func @transform_5(%arg0: i32) -> (i32, i32, i32) {
    %c0_i32 = arith.constant 0 : i32
    %c0_i32_0 = arith.constant 0 : i32
    %c0_i32_1 = arith.constant 0 : i32
    return %arg0, %c0_i32, %c0_i32_0 : i32, i32, i32
  }
}

module attributes {stable_mosaic.version = 11 : i64} {
  func.func @masked_double_softmax_kernel(%arg0: i32, %arg1: memref<8x128xf32, #tpu.memory_space<vmem>>, %arg2: memref<8x128xi32, #tpu.memory_space<vmem>>, %arg3: memref<1xi32, #tpu.memory_space<smem>>, %arg4: memref<8x128xf32, #tpu.memory_space<vmem>>, %arg5: memref<8x128xf32, #tpu.memory_space<vmem>>) attributes {dimension_semantics = [#tpu.dimension_semantics<arbitrary>], iteration_bounds = array<i64: 1>, scalar_prefetch = 0 : i64, scratch_operands = 0 : i64, tpu.core_type = #tpu.core_type<tc>, window_params = [{pipeline_mode = #tpu.pipeline_mode<synchronous>, transform_indices = @transform_0, window_bounds = array<i64: 8, 128>}, {pipeline_mode = #tpu.pipeline_mode<synchronous>, transform_indices = @transform_1, window_bounds = array<i64: 8, 128>}, {transform_indices = @transform_2, window_bounds = array<i64: 1>}, {pipeline_mode = #tpu.pipeline_mode<synchronous>, transform_indices = @transform_3, window_bounds = array<i64: 8, 128>}, {pipeline_mode = #tpu.pipeline_mode<synchronous>, transform_indices = @transform_4, window_bounds = array<i64: 8, 128>}]} {
    %c0 = arith.constant 0 : index
    %c0_0 = arith.constant 0 : index
    %0 = vector.load %arg1[%c0, %c0_0] : memref<8x128xf32, #tpu.memory_space<vmem>>, vector<8x128xf32>
    %c0_1 = arith.constant 0 : index
    %c0_2 = arith.constant 0 : index
    %1 = vector.load %arg2[%c0_1, %c0_2] : memref<8x128xi32, #tpu.memory_space<vmem>>, vector<8x128xi32>
    %c0_3 = arith.constant 0 : index
    %2 = memref.load %arg3[%c0_3] : memref<1xi32, #tpu.memory_space<smem>>
    %3 = vector.broadcast %2 : i32 to vector<8x128xi32>
    %4 = arith.cmpi eq, %1, %3 : vector<8x128xi32>
    %cst = arith.constant -1.000000e+30 : f32
    %5 = vector.broadcast %cst : f32 to vector<8x128xf32>
    %6 = arith.select %4, %0, %5 : vector<8x128xi1>, vector<8x128xf32>
    %cst_4 = arith.constant dense<0xFF800000> : vector<8xf32>
    %7 = vector.multi_reduction <maximumf>, %6, %cst_4 [1] : vector<8x128xf32> to vector<8xf32>
    %8 = vector.shape_cast %7 : vector<8xf32> to vector<8x1xf32>
    %cst_5 = arith.constant dense<0xFF800000> : vector<1xf32>
    %9 = vector.multi_reduction <maximumf>, %8, %cst_5 [0] : vector<8x1xf32> to vector<1xf32>
    %10 = vector.shape_cast %9 : vector<1xf32> to vector<1x1xf32>
    %11 = vector.broadcast %10 : vector<1x1xf32> to vector<8x128xf32>
    %12 = arith.subf %6, %11 : vector<8x128xf32>
    %13 = math.exp %12 : vector<8x128xf32>
    %cst_6 = arith.constant 0.000000e+00 : f32
    %14 = vector.broadcast %cst_6 : f32 to vector<8x128xf32>
    %15 = arith.select %4, %13, %14 : vector<8x128xi1>, vector<8x128xf32>
    %cst_7 = arith.constant dense<0.000000e+00> : vector<8xf32>
    %16 = vector.multi_reduction <add>, %15, %cst_7 [1] : vector<8x128xf32> to vector<8xf32>
    %17 = vector.shape_cast %16 : vector<8xf32> to vector<8x1xf32>
    %cst_8 = arith.constant dense<0.000000e+00> : vector<1xf32>
    %18 = vector.multi_reduction <add>, %17, %cst_8 [0] : vector<8x1xf32> to vector<1xf32>
    %19 = vector.shape_cast %18 : vector<1xf32> to vector<1x1xf32>
    %cst_9 = arith.constant 1.000000e-30 : f32
    %20 = vector.broadcast %cst_9 : f32 to vector<1x1xf32>
    %21 = arith.maximumf %19, %20 : vector<1x1xf32>
    %22 = vector.broadcast %21 : vector<1x1xf32> to vector<8x128xf32>
    %23 = arith.divf %15, %22 : vector<8x128xf32>
    %c0_10 = arith.constant 0 : index
    %c0_11 = arith.constant 0 : index
    %24 = vector.load %arg4[%c0_10, %c0_11] : memref<8x128xf32, #tpu.memory_space<vmem>>, vector<8x128xf32>
    tpu.vector_store %arg4[%c0_10, %c0_11], %23 {strides = array<i32>} : memref<8x128xf32, #tpu.memory_space<vmem>>, vector<8x128xf32>,
    %cst_12 = arith.constant -1.000000e+30 : f32
    %25 = vector.broadcast %cst_12 : f32 to vector<8x128xf32>
    %26 = arith.select %4, %23, %25 : vector<8x128xi1>, vector<8x128xf32>
    %cst_13 = arith.constant dense<0xFF800000> : vector<8xf32>
    %27 = vector.multi_reduction <maximumf>, %26, %cst_13 [1] : vector<8x128xf32> to vector<8xf32>
    %28 = vector.shape_cast %27 : vector<8xf32> to vector<8x1xf32>
    %cst_14 = arith.constant dense<0xFF800000> : vector<1xf32>
    %29 = vector.multi_reduction <maximumf>, %28, %cst_14 [0] : vector<8x1xf32> to vector<1xf32>
    %30 = vector.shape_cast %29 : vector<1xf32> to vector<1x1xf32>
    %31 = vector.broadcast %30 : vector<1x1xf32> to vector<8x128xf32>
    %32 = arith.subf %26, %31 : vector<8x128xf32>
    %33 = math.exp %32 : vector<8x128xf32>
    %cst_15 = arith.constant 0.000000e+00 : f32
    %34 = vector.broadcast %cst_15 : f32 to vector<8x128xf32>
    %35 = arith.select %4, %33, %34 : vector<8x128xi1>, vector<8x128xf32>
    %cst_16 = arith.constant dense<0.000000e+00> : vector<8xf32>
    %36 = vector.multi_reduction <add>, %35, %cst_16 [1] : vector<8x128xf32> to vector<8xf32>
    %37 = vector.shape_cast %36 : vector<8xf32> to vector<8x1xf32>
    %cst_17 = arith.constant dense<0.000000e+00> : vector<1xf32>
    %38 = vector.multi_reduction <add>, %37, %cst_17 [0] : vector<8x1xf32> to vector<1xf32>
    %39 = vector.shape_cast %38 : vector<1xf32> to vector<1x1xf32>
    %cst_18 = arith.constant 1.000000e-30 : f32
    %40 = vector.broadcast %cst_18 : f32 to vector<1x1xf32>
    %41 = arith.maximumf %39, %40 : vector<1x1xf32>
    %42 = vector.broadcast %30 : vector<1x1xf32> to vector<8x128xf32>
    %43 = arith.subf %23, %42 : vector<8x128xf32>
    %44 = math.log %41 : vector<1x1xf32>
    %45 = vector.broadcast %44 : vector<1x1xf32> to vector<8x128xf32>
    %46 = arith.subf %43, %45 : vector<8x128xf32>
    %cst_19 = arith.constant 0.000000e+00 : f32
    %47 = vector.broadcast %cst_19 : f32 to vector<8x128xf32>
    %48 = arith.select %4, %46, %47 : vector<8x128xi1>, vector<8x128xf32>
    %c0_20 = arith.constant 0 : index
    %c0_21 = arith.constant 0 : index
    %49 = vector.load %arg5[%c0_20, %c0_21] : memref<8x128xf32, #tpu.memory_space<vmem>>, vector<8x128xf32>
    tpu.vector_store %arg5[%c0_20, %c0_21], %48 {strides = array<i32>} : memref<8x128xf32, #tpu.memory_space<vmem>>, vector<8x128xf32>,
    return
  }
  func.func @transform_0(%arg0: i32) -> (i32, i32) {
    %c0_i32 = arith.constant 0 : i32
    %c0_i32_0 = arith.constant 0 : i32
    %c0_i32_1 = arith.constant 0 : i32
    return %c0_i32, %c0_i32_0 : i32, i32
  }
  func.func @transform_1(%arg0: i32) -> (i32, i32) {
    %c0_i32 = arith.constant 0 : i32
    %c0_i32_0 = arith.constant 0 : i32
    %c0_i32_1 = arith.constant 0 : i32
    return %c0_i32, %c0_i32_0 : i32, i32
  }
  func.func @transform_2(%arg0: i32) -> i32 {
    %c0_i32 = arith.constant 0 : i32
    %c0_i32_0 = arith.constant 0 : i32
    return %c0_i32 : i32
  }
  func.func @transform_3(%arg0: i32) -> (i32, i32) {
    %c0_i32 = arith.constant 0 : i32
    %c0_i32_0 = arith.constant 0 : i32
    %c0_i32_1 = arith.constant 0 : i32
    return %c0_i32, %c0_i32_0 : i32, i32
  }
  func.func @transform_4(%arg0: i32) -> (i32, i32) {
    %c0_i32 = arith.constant 0 : i32
    %c0_i32_0 = arith.constant 0 : i32
    %c0_i32_1 = arith.constant 0 : i32
    return %c0_i32, %c0_i32_0 : i32, i32
  }
}

</mosaic_0001>

<llo_original>
// kernel: cited_text_span_selector_forward.2
$region0: #{cited_text_span_selector_forward.2}
  #allocation0 [shape = 'u32[]', space=smem, size = 0x4, offset = 0x4, fixed_abs, tag = 'smem constant byte address 0x4 - core index']
  #allocation1 [shape = 'u32[144,128]{1,0:T(1,128)}', space=vmem, size = 0x12000, scoped, tag = 'internal scratch']
  #allocation2 [shape = 'f32[1]{0:T(128)S(6)}', space=smem, size = 0x200, scoped, tag = 'scoped memory for cited_text_span_selector_forward.2']
  %s0 = inlined_call_operand.vmem [shape: f32[32,32], index: 0, kind: input, shape index: {}]
  %s1 = inlined_call_operand.vmem [shape: bf16[32,32], index: 1, kind: input, shape index: {}]
  %s2 = inlined_call_operand.vmem [shape: f32[1,32], index: 2, kind: input, shape index: {}]
  %s3 = inlined_call_operand.vmem [shape: bf16[1,32], index: 3, kind: input, shape index: {}]
  %s4 = inlined_call_operand.<no memory space> [shape: f32[1], index: 4, kind: input, shape index: {}]
  %s5 = inlined_call_operand.vmem [shape: f32[1,1,32], index: 5, kind: output, shape index: {}]
  %s6 = sld [smem:[#allocation0]]
  $region30: #{cited_text_span_selector_forward.2} parent=0
    _
  %s8 = ssub.s32 1, %s6
  %s9 = scalar_select 0, %s8, %s6
  %10 = sst [smem:[#allocation2]] %s4
  // Predicated region
  $region2: #{cited_text_span_selector_forward.2} parent=0 // pred_check
    _
  $region3: #{cited_text_span_selector_forward.2} parent=0 // pred_check_branch
    %12 = sbr.rel (0) target = $region5
  $region4: #{cited_text_span_selector_forward.2} parent=0 // pred_region
    _
  $region5: #{cited_text_span_selector_forward.2} parent=0 // pred_fallthru
    _
  // Predicated region
  $region6: #{cited_text_span_selector_forward.2} parent=0 // pred_check
    _
  $region7: #{cited_text_span_selector_forward.2} parent=0 // pred_check_branch
    %14 = sbr.rel (0) target = $region9
  $region8: #{cited_text_span_selector_forward.2} parent=0 // pred_region
    _
  $region9: #{cited_text_span_selector_forward.2} parent=0 // pred_fallthru
    _
  // Predicated region
  $region10: #{cited_text_span_selector_forward.2} parent=0 // pred_check
    _
  $region11: #{cited_text_span_selector_forward.2} parent=0 // pred_check_branch
    %16 = sbr.rel (0) target = $region13
  $region12: #{cited_text_span_selector_forward.2} parent=0 // pred_region
    _
  $region13: #{cited_text_span_selector_forward.2} parent=0 // pred_fallthru
    _
  // Predicated region
  $region14: #{cited_text_span_selector_forward.2} parent=0 // pred_check
    _
  $region15: #{cited_text_span_selector_forward.2} parent=0 // pred_check_branch
    %18 = sbr.rel (0) target = $region17
  $region16: #{cited_text_span_selector_forward.2} parent=0 // pred_region
    _
  $region17: #{cited_text_span_selector_forward.2} parent=0 // pred_fallthru
    _
  // Predicated region
  $region18: #{cited_text_span_selector_forward.2} parent=0 // pred_check
    _
  $region19: #{cited_text_span_selector_forward.2} parent=0 // pred_check_branch
    %20 = sbr.rel (0) target = $region21
  $region20: #{cited_text_span_selector_forward.2} parent=0 // pred_region
    _
  $region21: #{cited_text_span_selector_forward.2} parent=0 // pred_fallthru
    _
  %v22 = vld [vmem:[%s0] sm:$0xff]
  %v23 = vld [vmem:[%s0 + $0x8] sm:$0xff]
  %v24 = vld [vmem:[%s0 + $0x10] sm:$0xff]
  %v25 = vld [vmem:[%s0 + $0x18] sm:$0xff]
  %v26 = vpack.c.bf16 %v23, %v22
  %v27 = vpack.c.bf16 %v25, %v24
  %v28 = vld [vmem:[%s1] sm:$0xf]
  %v29 = vld [vmem:[%s1 + $0x4] sm:$0xf]
  %v30 = vld [vmem:[%s1 + $0x8] sm:$0xf]
  %v31 = vld [vmem:[%s1 + $0xc] sm:$0xf]
  %v32 = vld [vmem:[%s2] sm:$0x1]
  %v34 = vlaneseq
  %v35 = vshrl.u32 %v34, 7
  %v36 = vsub.s32 0, %v35
  %v37 = vrot.slane %v32, %v36
  %v43 = vunpack.c.l.b16 %v28
  %v44 = vunpack.c.l.b16 %v29
  %v45 = vunpack.c.l.b16 %v30
  %v46 = vunpack.c.l.b16 %v31
  %v47 = vpack.c.b16 %v44, %v43
  %v48 = vpack.c.b16 %v46, %v45
  %vm51 = vcmask 261120
  %v53 = vsel %vm51, %v26, 0
  %v56 = vsel %vm51, %v27, 0
  %58 = vmatprep.subr.bf16.mxu0 0
  %59 = vmatpush1.bf16.msra.mxu0 %v47
  %60 = vmatprep.subr.bf16.mxu0 0
  %61 = vmatpush1.bf16.msra.mxu0 %v48
  %62 = vmatprep.subr.bf16.mxu0 0
  %63 = vmatpush1.bf16.msra.mxu0 0
  %64 = vmatprep.subr.bf16.mxu0 0
  %65 = vmatpush1.bf16.msra.mxu0 0
  %66 = vmatprep.subr.bf16.mxu0 0
  %67 = vmatpush1.bf16.msra.mxu0 0
  %68 = vmatprep.subr.bf16.mxu0 0
  %69 = vmatpush1.bf16.msra.mxu0 0
  %70 = vmatprep.subr.bf16.mxu0 0
  %71 = vmatpush1.bf16.msra.mxu0 0
  %72 = vmatprep.subr.bf16.mxu0 0
  %73 = vmatpush1.bf16.msra.mxu0 0
  %74 = vmatprep.subr.bf16.mxu0 0
  %75 = vmatpush1.bf16.msra.mxu0 0
  %76 = vmatprep.subr.bf16.mxu0 0
  %77 = vmatpush1.bf16.msra.mxu0 0
  %78 = vmatprep.subr.bf16.mxu0 0
  %79 = vmatpush1.bf16.msra.mxu0 0
  %80 = vmatprep.subr.bf16.mxu0 0
  %81 = vmatpush1.bf16.msra.mxu0 0
  %82 = vmatprep.subr.bf16.mxu0 0
  %83 = vmatpush1.bf16.msra.mxu0 0
  %84 = vmatprep.subr.bf16.mxu0 0
  %85 = vmatpush1.bf16.msra.mxu0 0
  %86 = vmatprep.subr.bf16.mxu0 0
  %87 = vmatpush1.bf16.msra.mxu0 0
  %88 = vmatprep.subr.bf16.mxu0 0
  %89 = vmatpush1.bf16.msra.mxu0 0
  %90 = vmatprep.mubr.bf16.mxu0 0
  %91 = vmatmul.mubr.bf16.gmra.mrb[0].mxu0 %v53
  %v92 = vpop.f32.mrb[0].mxu0
  %v93 = vadd.f32 %v37, %v92
  %v94 = vpop.f32.mrb[0].mxu0
  %v95 = vpop.f32.mrb[0].mxu0
  %v96 = vadd.f32 %v37, %v95
  %v97 = vpop.f32.mrb[0].mxu0
  %98 = vmatprep.mubr.bf16.mxu0 0
  %99 = vmatmul.mubr.bf16.gmra.mrb[0].mxu0 %v56
  %v100 = vpop.f32.mrb[0].mxu0
  %v101 = vadd.f32 %v37, %v100
  %v102 = vpop.f32.mrb[0].mxu0
  %v103 = vpop.f32.mrb[0].mxu0
  %v104 = vadd.f32 %v37, %v103
  %v105 = vpop.f32.mrb[0].mxu0
  %106 = vdwg.mxu0
  %v107 = vtanh.pop %v93
  %v108 = vtanh.pop %v96
  %v109 = vtanh.pop %v101
  %v110 = vtanh.pop %v104
  %v111 = vld [vmem:[%s3] sm:$0x1]
  %v112 = vpack.c.bf16 %v108, %v107
  %v113 = vpack.c.bf16 %v110, %v109
  %s114 = sld [smem:[#allocation2]]
  %v115 = vstv %s114
  %v117 = vsel %vm51, %v111, 0
  %v120 = vsel %vm51, %v112, 0
  %v123 = vsel %vm51, %v113, 0
  %125 = vmatprep.subr.bf16.mxu0 0
  %126 = vmatpush1.bf16.xpose.msra.mxu0 %v120
  %127 = vmatprep.subr.bf16.mxu0 0
  %128 = vmatpush1.bf16.xpose.msra.mxu0 %v123
  %129 = vmatprep.subr.bf16.mxu0 0
  %130 = vmatpush1.bf16.xpose.msra.mxu0 0
  %131 = vmatprep.subr.bf16.mxu0 0
  %132 = vmatpush1.bf16.xpose.msra.mxu0 0
  %133 = vmatprep.subr.bf16.mxu0 0
  %134 = vmatpush1.bf16.xpose.msra.mxu0 0
  %135 = vmatprep.subr.bf16.mxu0 0
  %136 = vmatpush1.bf16.xpose.msra.mxu0 0
  %137 = vmatprep.subr.bf16.mxu0 0
  %138 = vmatpush1.bf16.xpose.msra.mxu0 0
  %139 = vmatprep.subr.bf16.mxu0 0
  %140 = vmatpush1.bf16.xpose.msra.mxu0 0
  %141 = vmatprep.subr.bf16.mxu0 0
  %142 = vmatpush1.bf16.xpose.msra.mxu0 0
  %143 = vmatprep.subr.bf16.mxu0 0
  %144 = vmatpush1.bf16.xpose.msra.mxu0 0
  %145 = vmatprep.subr.bf16.mxu0 0
  %146 = vmatpush1.bf16.xpose.msra.mxu0 0
  %147 = vmatprep.subr.bf16.mxu0 0
  %148 = vmatpush1.bf16.xpose.msra.mxu0 0
  %149 = vmatprep.subr.bf16.mxu0 0
  %150 = vmatpush1.bf16.xpose.msra.mxu0 0
  %151 = vmatprep.subr.bf16.mxu0 0
  %152 = vmatpush1.bf16.xpose.msra.mxu0 0
  %153 = vmatprep.subr.bf16.mxu0 0
  %154 = vmatpush1.bf16.xpose.msra.mxu0 0
  %155 = vmatprep.subr.bf16.mxu0 0
  %156 = vmatpush1.bf16.xpose.msra.mxu0 0
  %157 = vmatprep.mubr.bf16.mxu0 0
  %158 = vmatmul.mubr.bf16.gmra.mrb[0].mxu0 %v117
  %v159 = vpop.f32.mrb[0].mxu0
  %v160 = vadd.f32 %v115, %v159
  %v161 = vpop.f32.mrb[0].mxu0
  %v162 = vpop.f32.mrb[0].mxu0
  %v163 = vpop.f32.mrb[0].mxu0
  %164 = vdwg.mxu0
  %vm165 = vcmask 253952
  %166 = vst.msk [vmem:[%s5] sm:$0x1] %vm165, %v160
  // Predicated region
  $region22: #{cited_text_span_selector_forward.2} parent=0 // pred_check
    _
  $region23: #{cited_text_span_selector_forward.2} parent=0 // pred_check_branch
    %168 = sbr.rel (0) target = $region25
  $region24: #{cited_text_span_selector_forward.2} parent=0 // pred_region
    _
  $region25: #{cited_text_span_selector_forward.2} parent=0 // pred_fallthru
    _
  // Predicated region
  $region26: #{cited_text_span_selector_forward.2} parent=0 // pred_check
    _
  $region27: #{cited_text_span_selector_forward.2} parent=0 // pred_check_branch
    %170 = sbr.rel (0) target = $region29
  $region28: #{cited_text_span_selector_forward.2} parent=0 // pred_region
    _
  $region29: #{cited_text_span_selector_forward.2} parent=0 // pred_fallthru
    _

// kernel: cited_text_span_selector_forward.3
$region0: #{cited_text_span_selector_forward.3}
  #allocation0 [shape = 'u32[]', space=smem, size = 0x4, offset = 0x4, fixed_abs, tag = 'smem constant byte address 0x4 - core index']
  #allocation1 [shape = 'u32[144,128]{1,0:T(1,128)}', space=vmem, size = 0x12000, scoped, tag = 'internal scratch']
  #allocation2 [shape = 's32[1]{0:T(128)S(6)}', space=smem, size = 0x200, scoped, tag = 'scoped memory for cited_text_span_selector_forward.3']
  %s0 = inlined_call_operand.vmem [shape: f32[8,128], index: 0, kind: input, shape index: {}]
  %s1 = inlined_call_operand.vmem [shape: s32[8,128], index: 1, kind: input, shape index: {}]
  %s2 = inlined_call_operand.<no memory space> [shape: s32[1], index: 2, kind: input, shape index: {}]
  %s3 = inlined_call_operand.vmem [shape: f32[8,128], index: 3, kind: output, shape index: {0}]
  %s4 = inlined_call_operand.vmem [shape: f32[8,128], index: 4, kind: output, shape index: {1}]
  %5 = xla_tuple %s3, %s4
  %s6 = sld [smem:[#allocation0]]
  $region30: #{cited_text_span_selector_forward.3} parent=0
    _
  %s8 = ssub.s32 1, %s6
  %s9 = scalar_select 0, %s8, %s6
  %10 = sst [smem:[#allocation2]] %s2
  // Predicated region
  $region2: #{cited_text_span_selector_forward.3} parent=0 // pred_check
    _
  $region3: #{cited_text_span_selector_forward.3} parent=0 // pred_check_branch
    %12 = sbr.rel (0) target = $region5
  $region4: #{cited_text_span_selector_forward.3} parent=0 // pred_region
    _
  $region5: #{cited_text_span_selector_forward.3} parent=0 // pred_fallthru
    _
  // Predicated region
  $region6: #{cited_text_span_selector_forward.3} parent=0 // pred_check
    _
  $region7: #{cited_text_span_selector_forward.3} parent=0 // pred_check_branch
    %14 = sbr.rel (0) target = $region9
  $region8: #{cited_text_span_selector_forward.3} parent=0 // pred_region
    _
  $region9: #{cited_text_span_selector_forward.3} parent=0 // pred_fallthru
    _
  // Predicated region
  $region10: #{cited_text_span_selector_forward.3} parent=0 // pred_check
    _
  $region11: #{cited_text_span_selector_forward.3} parent=0 // pred_check_branch
    %16 = sbr.rel (0) target = $region13
  $region12: #{cited_text_span_selector_forward.3} parent=0 // pred_region
    _
  $region13: #{cited_text_span_selector_forward.3} parent=0 // pred_fallthru
    _
  %v17 = vld [vmem:[%s0] sm:$0xff]
  %v18 = vld [vmem:[%s1] sm:$0xff]
  %s19 = sld [smem:[#allocation2]]
  %v20 = vstv %s19
  %vm21 = vcmp.eq.s32.totalorder %v18, %v20
  %v22 = vsel %vm21, %v17, -1e+30
  %23 = vmax.xlane.f32.xlu0 %v22
  %v24 = vpop.xlane.xlu0 %23
  %v25 = vrot.slane %v24, 4
  %v26 = vmax.f32 %v24, %v25
  %v27 = vrot.slane %v26, 2
  %v28 = vmax.f32 %v26, %v27
  %v29 = vrot.slane %v28, 1
  %v30 = vmax.f32 %v28, %v29
  %v31 = vsub.f32 %v22, %v30
  %v32 = vmul.f32 %v31, 1.442695
  %v33 = vpow.pop %v32
  %v34 = vsel %vm21, %v33, 0.0
  %35 = vadd.xlane.f32.xlu0 %v34
  %v36 = vpop.xlane.xlu0 %35
  %v37 = vrot.slane %v36, 4
  %v38 = vadd.f32 %v36, %v37
  %v39 = vrot.slane %v38, 2
  %v40 = vadd.f32 %v38, %v39
  %v41 = vrot.slane %v40, 1
  %v42 = vadd.f32 %v40, %v41
  %v43 = vmax.f32 %v42, 1e-30
  %v44 = vrcp.pop %v43
  %v45 = vmul.f32 %v34, %v44
  %46 = vst [vmem:[%s3] sm:$0xff] %v45
  %v47 = vsel %vm21, %v45, -1e+30
  %48 = vmax.xlane.f32.xlu0 %v47
  %v49 = vpop.xlane.xlu0 %48
  %v50 = vrot.slane %v49, 4
  %v51 = vmax.f32 %v49, %v50
  %v52 = vrot.slane %v51, 2
  %v53 = vmax.f32 %v51, %v52
  %v54 = vrot.slane %v53, 1
  %v55 = vmax.f32 %v53, %v54
  %v56 = vsub.f32 %v47, %v55
  %v57 = vmul.f32 %v56, 1.442695
  %v58 = vpow.pop %v57
  %v59 = vsel %vm21, %v58, 0.0
  %60 = vadd.xlane.f32.xlu0 %v59
  %v61 = vpop.xlane.xlu0 %60
  %v62 = vrot.slane %v61, 4
  %v63 = vadd.f32 %v61, %v62
  %v64 = vrot.slane %v63, 2
  %v65 = vadd.f32 %v63, %v64
  %v66 = vrot.slane %v65, 1
  %v67 = vadd.f32 %v65, %v66
  %v68 = vmax.f32 %v67, 1e-30
  %v69 = vsub.f32 %v45, %v55
  %v70 = vlog2.pop %v68
  %v71 = vmul.f32 %v70, 0.6931472
  %v72 = vsub.f32 %v69, %v71
  %v73 = vsel %vm21, %v72, 0.0
  %74 = vst [vmem:[%s4] sm:$0xff] %v73
  // Predicated region
  $region14: #{cited_text_span_selector_forward.3} parent=0 // pred_check
    _
  $region15: #{cited_text_span_selector_forward.3} parent=0 // pred_check_branch
    %76 = sbr.rel (0) target = $region17
  $region16: #{cited_text_span_selector_forward.3} parent=0 // pred_region
    _
  $region17: #{cited_text_span_selector_forward.3} parent=0 // pred_fallthru
    _
  // Predicated region
  $region18: #{cited_text_span_selector_forward.3} parent=0 // pred_check
    _
  $region19: #{cited_text_span_selector_forward.3} parent=0 // pred_check_branch
    %78 = sbr.rel (0) target = $region21
  $region20: #{cited_text_span_selector_forward.3} parent=0 // pred_region
    _
  $region21: #{cited_text_span_selector_forward.3} parent=0 // pred_fallthru
    _
  // Predicated region
  $region22: #{cited_text_span_selector_forward.3} parent=0 // pred_check
    _
  $region23: #{cited_text_span_selector_forward.3} parent=0 // pred_check_branch
    %80 = sbr.rel (0) target = $region25
  $region24: #{cited_text_span_selector_forward.3} parent=0 // pred_region
    _
  $region25: #{cited_text_span_selector_forward.3} parent=0 // pred_fallthru
    _
  // Predicated region
  $region26: #{cited_text_span_selector_forward.3} parent=0 // pred_check
    _
  $region27: #{cited_text_span_selector_forward.3} parent=0 // pred_check_branch
    %82 = sbr.rel (0) target = $region29
  $region28: #{cited_text_span_selector_forward.3} parent=0 // pred_region
    _
  $region29: #{cited_text_span_selector_forward.3} parent=0 // pred_fallthru
    _

</llo_original>
